<compile_context>
chip_gen: v7x
topology: tpu7x:2x2x1
jax: 0.10.0
libtpu: 0.0.40
codegen_flags: <defaults>
</compile_context>

<pallas_src>
import functools

import jax
import jax.numpy as jnp
from jax.experimental import pallas as pl
from jax.experimental.pallas import tpu as pltpu


# ----------------------------------------------------------------------------
# kernel bodies
# ----------------------------------------------------------------------------
def _rmsnorm_core(x, w, eps, out_dtype):
    # Norm statistics in f32 (also avoids bf16 VALU paths on v5e); cast back to
    # the input dtype before the weight multiply, matching the torch order.
    input_dtype = x.dtype
    x_f32 = x.astype(jnp.float32)
    var = jnp.mean(x_f32 * x_f32, axis=-1, keepdims=True)
    y = x_f32 * jax.lax.rsqrt(var + eps)
    y = y.astype(input_dtype)
    return (w * y).astype(out_dtype)


def _rmsnorm_kernel(x_ref, w_ref, o_ref, *, eps):
    o_ref[...] = _rmsnorm_core(x_ref[...], w_ref[...], eps, o_ref.dtype)


def _rmsnorm_residual_kernel(x_ref, r_ref, w_ref, o_ref, *, eps):
    # Residual add happens in the (promoted) input dtype, as in torch.
    xs = x_ref[...] + r_ref[...]
    o_ref[...] = _rmsnorm_core(xs, w_ref[...], eps, o_ref.dtype)


# ----------------------------------------------------------------------------
# tiling heuristics
# ----------------------------------------------------------------------------
def _round_up(x, m):
    return ((x + m - 1) // m) * m


def _sublane_multiple(dtype):
    # 8 rows/vreg for 32-bit, 16 for bf16, 32 for int8/fp8.
    itemsize = jnp.dtype(dtype).itemsize
    return max(8, 32 // max(itemsize, 1))


def _vmem_capacity_bytes():
    # Per-generation physical VMEM (v5e/v6e: 128 MiB, v7x: 64 MiB per TC).
    try:
        return int(pltpu.get_tpu_info().vmem_capacity_bytes)
    except Exception:
        return 128 * 1024 * 1024


def _select_row_block(n_rows, hidden, in_dtype, out_dtype, n_row_inputs,
                      tile_budget_bytes):
    in_bytes = jnp.dtype(in_dtype).itemsize
    out_bytes = jnp.dtype(out_dtype).itemsize
    # Double-buffered pipelined row-blocked arrays + allowance for two f32
    # elementwise temporaries of the same tile shape inside the body.
    per_row = 2 * (n_row_inputs * in_bytes + out_bytes) * hidden + 2 * 4 * hidden
    max_rows = max(1, tile_budget_bytes // per_row)

    sub = _sublane_multiple(in_dtype)
    rb = min(1024, max_rows)
    rb = max(sub, (rb // sub) * sub)

    # Don't exceed what the (sublane-rounded) problem actually has.
    rb = min(rb, _round_up(n_rows, sub))

    # Keep enough grid steps for load balancing across v7x's 2 TensorCores.
    min_steps = 16
    if n_rows // rb < min_steps and n_rows >= min_steps * sub:
        rb = max(sub, ((n_rows // min_steps) // sub) * sub)
    return rb


# ----------------------------------------------------------------------------
# wrapper
# ----------------------------------------------------------------------------
def rmsnorm(hidden_states, weight, residual=None, eps=1e-6, row_block=None):
    """Pallas RMSNorm. Returns (normalized, None) to mirror the torch forward."""
    orig_shape = hidden_states.shape
    hidden = orig_shape[-1]
    # NOTE: for real workloads hidden should be a multiple of 128 to keep
    # stores lane-dense; smaller hidden still works (full-dim block) but wastes
    # store bandwidth.
    x2d = hidden_states.reshape(-1, hidden)
    n_rows = x2d.shape[0]

    input_dtype = (jnp.result_type(hidden_states.dtype, residual.dtype)
                   if residual is not None else hidden_states.dtype)
    out_dtype = jnp.result_type(weight.dtype, input_dtype)
    n_row_inputs = 1 if residual is None else 2

    capacity = _vmem_capacity_bytes()
    tile_budget = int(capacity * 0.4)
    vmem_limit = int(capacity * 0.9)

    if row_block is None:
        row_block = _select_row_block(n_rows, hidden, hidden_states.dtype,
                                      out_dtype, n_row_inputs, tile_budget)

    # Pad rows so tiles divide evenly (decouples tile choice from batch*seq).
    num_blocks = pl.cdiv(n_rows, row_block)
    padded_rows = num_blocks * row_block
    pad = padded_rows - n_rows
    if pad:
        x2d = jnp.pad(x2d, ((0, pad), (0, 0)))

    w2d = weight.reshape(1, hidden)

    row_spec = pl.BlockSpec((row_block, hidden), lambda i: (i, 0))
    w_spec = pl.BlockSpec((1, hidden), lambda i: (0, 0))  # constant block -> fetched once

    if residual is None:
        kernel = functools.partial(_rmsnorm_kernel, eps=eps)
        in_specs = [row_spec, w_spec]
        args = (x2d, w2d)
    else:
        r2d = residual.reshape(-1, hidden)
        if pad:
            r2d = jnp.pad(r2d, ((0, pad), (0, 0)))
        kernel = functools.partial(_rmsnorm_residual_kernel, eps=eps)
        in_specs = [row_spec, row_spec, w_spec]
        args = (x2d, r2d, w2d)

    out = pl.pallas_call(
        kernel,
        out_shape=jax.ShapeDtypeStruct((padded_rows, hidden), out_dtype),
        grid_spec=pltpu.PrefetchScalarGridSpec(
            num_scalar_prefetch=0,
            grid=(num_blocks,),
            in_specs=in_specs,
            out_specs=row_spec,
        ),
        compiler_params=pltpu.CompilerParams(
            dimension_semantics=("parallel",),
            vmem_limit_bytes=vmem_limit,
        ),
    )(*args)

    if pad:
        out = out[:n_rows]
    return out.reshape(orig_shape), None


# ----------------------------------------------------------------------------
# pure-JAX reference (matches the torch module semantics)
# ----------------------------------------------------------------------------
def rmsnorm_ref(hidden_states, weight, residual=None, eps=1e-6):
    if residual is not None:
        hidden_states = hidden_states + residual
    input_dtype = hidden_states.dtype
    hs = hidden_states.astype(jnp.float32)
    var = jnp.mean(hs * hs, axis=-1, keepdims=True)
    hs = hs * jax.lax.rsqrt(var + eps)
    hs = hs.astype(input_dtype)
    return weight * hs, None


if __name__ == "__main__":
    key = jax.random.PRNGKey(0)
    batch, seq, hidden = 2, 8, 32
    eps = 1e-6

    kx, kr, kx2, kr2 = jax.random.split(key, 4)
    x = jax.random.normal(kx, (batch, seq, hidden), dtype=jnp.float32)
    residual = jax.random.normal(kr, (batch, seq, hidden), dtype=jnp.float32)
    # deterministic params: module init is torch.ones(hidden_size)
    weight = jnp.ones((hidden,), dtype=jnp.float32)

    # no-residual path
    out, none_out = rmsnorm(x, weight, residual=None, eps=eps)
    out = jax.block_until_ready(out)
    ref, _ = rmsnorm_ref(x, weight, residual=None, eps=eps)
    assert none_out is None
    assert jnp.allclose(out, ref, atol=1e-5, rtol=1e-5)

    # residual path
    out_r, _ = rmsnorm(x, weight, residual=residual, eps=eps)
    out_r = jax.block_until_ready(out_r)
    ref_r, _ = rmsnorm_ref(x, weight, residual=residual, eps=eps)
    assert jnp.allclose(out_r, ref_r, atol=1e-5, rtol=1e-5)

    # non-divisible row count (exercises the padded-tail path)
    x_odd = jax.random.normal(kx2, (batch, 7, hidden), dtype=jnp.float32)
    r_odd = jax.random.normal(kr2, (batch, 7, hidden), dtype=jnp.float32)
    out_o, _ = rmsnorm(x_odd, weight, residual=r_odd, eps=eps)
    out_o = jax.block_until_ready(out_o)
    ref_o, _ = rmsnorm_ref(x_odd, weight, residual=r_odd, eps=eps)
    assert jnp.allclose(out_o, ref_o, atol=1e-5, rtol=1e-5)

    print("KERNEL_OK")
</pallas_src>

<mosaic_0001>
module attributes {stable_mosaic.version = 11 : i64} {
  func.func @_rmsnorm_kernel(%arg0: i32, %arg1: memref<16x32xf32, #tpu.memory_space<vmem>>, %arg2: memref<1x32xf32, #tpu.memory_space<vmem>>, %arg3: memref<16x32xf32, #tpu.memory_space<vmem>>) attributes {dimension_semantics = [#tpu.dimension_semantics<parallel>], iteration_bounds = array<i64: 1>, scalar_prefetch = 0 : i64, scratch_operands = 0 : i64, tpu.core_type = #tpu.core_type<tc>, window_params = [{transform_indices = @transform_0, window_bounds = array<i64: 16, 32>}, {pipeline_mode = #tpu.pipeline_mode<synchronous>, transform_indices = @transform_1, window_bounds = array<i64: 1, 32>}, {transform_indices = @transform_2, window_bounds = array<i64: 16, 32>}]} {
    %c0 = arith.constant 0 : index
    %c0_0 = arith.constant 0 : index
    %0 = vector.load %arg1[%c0, %c0_0] : memref<16x32xf32, #tpu.memory_space<vmem>>, vector<16x32xf32>
    %c0_1 = arith.constant 0 : index
    %c0_2 = arith.constant 0 : index
    %1 = vector.load %arg2[%c0_1, %c0_2] : memref<1x32xf32, #tpu.memory_space<vmem>>, vector<1x32xf32>
    %2 = arith.mulf %0, %0 : vector<16x32xf32>
    %cst = arith.constant dense<0.000000e+00> : vector<16xf32>
    %3 = vector.multi_reduction <add>, %2, %cst [1] : vector<16x32xf32> to vector<16xf32>
    %4 = vector.shape_cast %3 : vector<16xf32> to vector<16x1xf32>
    %cst_3 = arith.constant 3.200000e+01 : f32
    %5 = vector.broadcast %cst_3 : f32 to vector<16x1xf32>
    %6 = arith.divf %4, %5 : vector<16x1xf32>
    %cst_4 = arith.constant 9.99999997E-7 : f32
    %7 = vector.broadcast %cst_4 : f32 to vector<16x1xf32>
    %8 = arith.addf %6, %7 : vector<16x1xf32>
    %9 = math.rsqrt %8 : vector<16x1xf32>
    %10 = vector.broadcast %9 : vector<16x1xf32> to vector<16x32xf32>
    %11 = arith.mulf %0, %10 : vector<16x32xf32>
    %12 = vector.broadcast %1 : vector<1x32xf32> to vector<16x32xf32>
    %13 = arith.mulf %12, %11 : vector<16x32xf32>
    %c0_5 = arith.constant 0 : index
    %c0_6 = arith.constant 0 : index
    %14 = vector.load %arg3[%c0_5, %c0_6] : memref<16x32xf32, #tpu.memory_space<vmem>>, vector<16x32xf32>
    tpu.vector_store %arg3[%c0_5, %c0_6], %13 {strides = array<i32>} : memref<16x32xf32, #tpu.memory_space<vmem>>, vector<16x32xf32>,
    return
  }
  func.func @transform_0(%arg0: i32) -> (i32, i32) {
    %c0_i32 = arith.constant 0 : i32
    %c0_i32_0 = arith.constant 0 : i32
    return %arg0, %c0_i32 : i32, i32
  }
  func.func @transform_1(%arg0: i32) -> (i32, i32) {
    %c0_i32 = arith.constant 0 : i32
    %c0_i32_0 = arith.constant 0 : i32
    %c0_i32_1 = arith.constant 0 : i32
    return %c0_i32, %c0_i32_0 : i32, i32
  }
  func.func @transform_2(%arg0: i32) -> (i32, i32) {
    %c0_i32 = arith.constant 0 : i32
    %c0_i32_0 = arith.constant 0 : i32
    return %arg0, %c0_i32 : i32, i32
  }
}

</mosaic_0001>

<llo_original>
// kernel: tpu_custom_call.1
$region0: #{tpu_custom_call.1}
  #allocation0 [shape = 'u32[]', space=smem, size = 0x4, offset = 0x4, fixed_abs, tag = 'smem constant byte address 0x4 - core index']
  #allocation1 [shape = 'u32[144,128]{1,0:T(1,128)}', space=vmem, size = 0x12000, scoped, tag = 'internal scratch']
  %s0 = inlined_call_operand.hbm [shape: f32[16,32], index: 0, kind: input, shape index: {}]
  %s1 = inlined_call_operand.hbm [shape: f32[1,32], index: 1, kind: input, shape index: {}]
  %s2 = inlined_call_operand.hbm [shape: f32[16,32], index: 2, kind: output, shape index: {}]
  %s3 = sld [smem:[#allocation0]]
  $region26: #{tpu_custom_call.1} parent=0
    _
  %s5 = ssub.s32 1, %s3
  %s6 = scalar_select 0, %s5, %s3
  $region1: #{tpu_custom_call.1} parent=0
    #allocation2 [shape = 'u8[8192]{0}', space=vmem, size = 0x2000, scoped, tag = 'input window, operand 0, single buffered']
    #allocation3 [shape = 's32[1]{0}', space=sflag, size = 0x4, scoped, tag = 'scoped memory for tpu_custom_call.1']
    #allocation4 [shape = 's32[1]{0}', space=sflag, size = 0x4, scoped, tag = 'scoped memory for tpu_custom_call.1']
    #allocation5 [shape = 'u8[512]{0}', space=vmem, size = 0x400, scoped, tag = 'input window, operand 1, single buffered']
    #allocation6 [shape = 's32[1]{0}', space=sflag, size = 0x4, scoped, tag = 'scoped memory for tpu_custom_call.1']
    #allocation7 [shape = 'u8[8192]{0}', space=vmem, size = 0x2000, scoped, tag = 'output window, operand 0, single buffered']
    %7 = vsyncpa [#allocation3], 0
    %8 = vsyncpa [#allocation6], 0
    %9 = vsyncpa [#allocation4], 0
    // Predicated region
    $region2: #{tpu_custom_call.1} parent=1 // pred_check
      _
    $region3: #{tpu_custom_call.1} parent=1 // pred_check_branch
      %11 = sbr.rel (0) target = $region5
    $region4: #{tpu_custom_call.1} parent=1 // pred_region
      %s13 = ssub.s32 256, 256
      %14 = vsyncadd [#allocation3], %s13
      %s15 = sshll.u32 [#allocation2], 4
      %s16 = int_to_ptr.vmem [resolvable:$true] %s15
      %21 = dma.hbm_to_vmem [thread:$0]  %s0, 256, %s16, [#allocation3], 128, 128, 8
    $region5: #{tpu_custom_call.1} parent=1 // pred_fallthru
      _
    // Predicated region
    $region6: #{tpu_custom_call.1} parent=1 // pred_check
      _
    $region7: #{tpu_custom_call.1} parent=1 // pred_check_branch
      %23 = sbr.rel (0) target = $region9
    $region8: #{tpu_custom_call.1} parent=1 // pred_region
      %s25 = ssub.s32 16, 16
      %26 = vsyncadd [#allocation6], %s25
      %s28 = sshll.u32 [#allocation5], 4
      %s29 = int_to_ptr.vmem [resolvable:$true] %s28
      %31 = dma.hbm_to_vmem [thread:$0]  %s1, 16, %s29, [#allocation6]
    $region9: #{tpu_custom_call.1} parent=1 // pred_fallthru
      _
    // Predicated region
    $region10: #{tpu_custom_call.1} parent=1 // pred_check
      _
    $region11: #{tpu_custom_call.1} parent=1 // pred_check_branch
      %33 = sbr.rel (0) target = $region13
    $region12: #{tpu_custom_call.1} parent=1 // pred_region
      %34 = dma.done [#allocation3], 256
    $region13: #{tpu_custom_call.1} parent=1 // pred_fallthru
      _
    // Predicated region
    $region14: #{tpu_custom_call.1} parent=1 // pred_check
      _
    $region15: #{tpu_custom_call.1} parent=1 // pred_check_branch
      %36 = sbr.rel (0) target = $region17
    $region16: #{tpu_custom_call.1} parent=1 // pred_region
      %37 = dma.done [#allocation6], 16
    $region17: #{tpu_custom_call.1} parent=1 // pred_fallthru
      _
    %v38 = vld [vmem:[#allocation2] sm:$0xff]
    %v39 = vld [vmem:[#allocation2 + $0x8] sm:$0xff]
    %v40 = vld [vmem:[#allocation5] sm:$0x1]
    %v41 = vmul.f32 %v38, %v38
    %v42 = vmul.f32 %v39, %v39
    %vm43 = vcmask 261120
    %v44 = vsel %vm43, %v41, 0.0
    %45 = vadd.xlane.f32.xlu0 %v44
    %v46 = vpop.xlane.xlu0 %45
    %v47 = vsel %vm43, %v42, 0.0
    %48 = vadd.xlane.f32.xlu0 %v47
    %v49 = vpop.xlane.xlu0 %48
    %v50 = vrcp.pop 32.0
    %v51 = vmul.f32 %v46, %v50
    %v52 = vmul.f32 %v49, %v50
    %v53 = vadd.f32 %v51, 1e-06
    %v54 = vadd.f32 %v52, 1e-06
    %v55 = vrsqrt.pop %v53
    %v56 = vrsqrt.pop %v54
    %v57 = vmul.f32 %v38, %v55
    %v58 = vmul.f32 %v39, %v56
    %v60 = vlaneseq
    %v61 = vshrl.u32 %v60, 7
    %v62 = vsub.s32 0, %v61
    %v63 = vrot.slane %v40, %v62
    %v65 = vmul.f32 %v63, %v57
    %v66 = vmul.f32 %v63, %v58
    %67 = vst.msk [vmem:[#allocation7] sm:$0xff] %vm43, %v65
    %68 = vst.msk [vmem:[#allocation7 + $0x8] sm:$0xff] %vm43, %v66
    // Predicated region
    $region18: #{tpu_custom_call.1} parent=1 // pred_check
      _
    $region19: #{tpu_custom_call.1} parent=1 // pred_check_branch
      %70 = sbr.rel (0) target = $region21
    $region20: #{tpu_custom_call.1} parent=1 // pred_region
      %s72 = ssub.s32 256, 256
      %73 = vsyncadd [#allocation4], %s72
      %s74 = sshll.u32 [#allocation7], 4
      %s75 = int_to_ptr.vmem [resolvable:$true] %s74
      %80 = dma.vmem_to_hbm [thread:$0]  %s75, 256, %s2, [#allocation4], 128, 128, 8
    $region21: #{tpu_custom_call.1} parent=1 // pred_fallthru
      _
    // Predicated region
    $region22: #{tpu_custom_call.1} parent=1 // pred_check
      _
    $region23: #{tpu_custom_call.1} parent=1 // pred_check_branch
      %82 = sbr.rel (0) target = $region25
    $region24: #{tpu_custom_call.1} parent=1 // pred_region
      %83 = dma.done [#allocation4], 256
    $region25: #{tpu_custom_call.1} parent=1 // pred_fallthru
      _
    %84 = vsyncpa [#allocation3], 1
    %85 = vsyncpa [#allocation6], 1
    %86 = vsyncpa [#allocation4], 1

</llo_original>
